<compile_context>
chip_gen: v7x
topology: tpu7x:2x2x1
jax: 0.10.0
libtpu: 0.0.40
codegen_flags: <defaults>
</compile_context>

<pallas_src>
import functools

import jax
import jax.numpy as jnp
from jax.experimental import pallas as pl
from jax.experimental.pallas import tpu as pltpu

EPS = 1e-20
LANE = 128
SUBLANE = 8
MAX_TILE_ROWS = 4096


def _round_up(x, m):
    return ((x + m - 1) // m) * m


def _vmem_limit_bytes():
    """Generation-aware scoped-VMEM limit (v5e/v6e: 128 MiB phys, v7x: 64 MiB)."""
    try:
        cap = int(pltpu.get_tpu_info().vmem_capacity_bytes)
    except Exception:
        cap = 64 * 1024 * 1024
    return int(min(cap // 2, 40 * 1024 * 1024))


def _pick_batch_tile(N, in_isz, out_isz, budget, soft):
    # VMEM bytes per batch row:
    #   2 inputs x double-buffered pipeline tiles
    #   (+ double-buffered output tile in soft mode; hard-mode (8,N) blocks ~ 0)
    #   ~5 full-tile f32/i32 temporaries inside the kernel body
    per_row = N * (4 * in_isz + (2 * out_isz if soft else 0) + 5 * 4)
    tb = budget // max(per_row, 1)
    tb = max(SUBLANE, (tb // SUBLANE) * SUBLANE)
    return min(tb, MAX_TILE_ROWS)


def _gumbel_logits(logits_ref, u_ref):
    # f32 math regardless of input dtype (v5e VPU/EUP have no bf16 path).
    logits = logits_ref[...].astype(jnp.float32)
    u = u_ref[...].astype(jnp.float32)
    g = -jnp.log(-jnp.log(u + EPS) + EPS)
    return logits + g


def _soft_kernel(logits_ref, u_ref, out_ref, *, inv_temp):
    z = _gumbel_logits(logits_ref, u_ref) * inv_temp
    z_max = jnp.max(z, axis=1, keepdims=True)
    ez = jnp.exp(z - z_max)
    denom = jnp.sum(ez, axis=1, keepdims=True)
    # Exact divide: kernel is HBM-bound, so exact softmax parity is free.
    out_ref[...] = (ez / denom).astype(out_ref.dtype)


def _hard_kernel(logits_ref, u_ref, hits_ref, *, tile_b, batch):
    i = pl.program_id(0)
    # softmax and 1/temperature are monotone -> argmax(softmax(z/T)) == argmax(z):
    # skip exp/sum/div AND the temperature scaling entirely.
    z = _gumbel_logits(logits_ref, u_ref)
    tb, n = z.shape
    col = jax.lax.broadcasted_iota(jnp.int32, (tb, n), 1)

    # first-max argmax per row (matches torch.max / jnp.argmax tie-breaking)
    max_val = jnp.max(z, axis=1, keepdims=True)
    first_idx = jnp.min(jnp.where(z >= max_val, col, n), axis=1, keepdims=True)

    # Mask rows past the real batch on the edge tile; garbage/NaN rows in the
    # partial block can never contribute to the hit row.
    row = jax.lax.broadcasted_iota(jnp.int32, (tb, 1), 0)
    valid = (i * tile_b + row) < batch

    onehot = jnp.where((col == first_idx) & valid, 1.0, 0.0)
    hit = jnp.max(onehot, axis=0, keepdims=True)                 # (1, n)
    hits_ref[...] = jnp.broadcast_to(hit, hits_ref.shape).astype(hits_ref.dtype)


@functools.partial(jax.jit, static_argnames=("temperature", "hard", "batch_tile"))
def gumbel_softmax_sampling(logits, u, *, temperature=30.0, hard=True,
                            batch_tile=None):
    """Forward pass of GumbelSoftmaxSampling. `u` are the Uniform(0,1) samples."""
    B, N = logits.shape
    dtype = logits.dtype
    in_isz = jnp.dtype(dtype).itemsize
    vmem_limit = _vmem_limit_bytes()
    tile_budget = (3 * vmem_limit) // 4

    # Batch tile (rows). Block last dim is the FULL category extent N -> no
    # host-side padding needed; for B <= 8 use tb == B (full-dim block is legal).
    if B <= SUBLANE:
        tb = B
    elif batch_tile is not None:
        tb = min(_round_up(int(batch_tile), SUBLANE), _round_up(B, SUBLANE))
    else:
        tb = _pick_batch_tile(N, in_isz, in_isz, tile_budget, soft=not hard)
        tb = min(tb, _round_up(B, SUBLANE))
    num_tiles = (B + tb - 1) // tb

    in_spec = pl.BlockSpec((tb, N), lambda i: (i, 0))
    cparams = pltpu.CompilerParams(
        dimension_semantics=("parallel",),        # no carried state in either mode
        vmem_limit_bytes=vmem_limit,
    )
    # TODO(synk): optionally generate the uniform noise in-kernel with
    # pltpu.prng_seed/prng_random_bits to cut HBM traffic ~1.4x; kept as an
    # explicit input here for bit-reproducibility against the reference RNG.

    if hard:
        kernel = functools.partial(_hard_kernel, tile_b=tb, batch=B)
        hits = pl.pallas_call(
            kernel,
            out_shape=jax.ShapeDtypeStruct((num_tiles * SUBLANE, N), jnp.float32),
            grid_spec=pltpu.PrefetchScalarGridSpec(
                num_scalar_prefetch=0,
                grid=(num_tiles,),
                in_specs=[in_spec, in_spec],
                out_specs=pl.BlockSpec((SUBLANE, N), lambda i: (i, 0)),
            ),
            compiler_params=cparams,
        )(logits, u)
        # Tiny fused epilogue: combine per-tile partial hit rows and scatter into
        # row 0 of an otherwise-zero output (single (B, N) write under jit).
        hit_row = jnp.max(hits, axis=0)                        # (N,)
        row_id = jax.lax.broadcasted_iota(jnp.int32, (B, 1), 0)
        return jnp.where(row_id == 0, hit_row[None, :], 0.0).astype(dtype)

    inv_temp = 1.0 / float(temperature)
    kernel = functools.partial(_soft_kernel, inv_temp=inv_temp)
    return pl.pallas_call(
        kernel,
        out_shape=jax.ShapeDtypeStruct((B, N), dtype),
        grid_spec=pltpu.PrefetchScalarGridSpec(
            num_scalar_prefetch=0,
            grid=(num_tiles,),
            in_specs=[in_spec, in_spec],
            out_specs=in_spec,
        ),
        compiler_params=cparams,
    )(logits, u)


def _reference(logits, u, temperature=30.0, hard=True):
    """Pure-JAX reference mirroring the PyTorch forward."""
    g = -jnp.log(-jnp.log(u + EPS) + EPS)
    dist = jax.nn.softmax((logits + g) / temperature, axis=1)
    if not hard:
        return dist
    idx = jnp.argmax(dist, axis=-1)                     # (B,)
    y_hard = jnp.zeros_like(dist).at[0, idx].set(1.0)   # PyTorch quirk: row 0 only
    return y_hard                                       # == y_hard - y.detach() + y (fwd)


if __name__ == "__main__":
    key = jax.random.PRNGKey(0)
    k1, k2, k3, k4 = jax.random.split(key, 4)

    # 1) small shape matching the module usage, hard (default) mode
    B, N = 4, 16
    logits = jax.random.normal(k1, (B, N), dtype=jnp.float32)
    u = jax.random.uniform(k2, (B, N), dtype=jnp.float32)
    out = jax.block_until_ready(
        gumbel_softmax_sampling(logits, u, temperature=30.0, hard=True))
    ref = _reference(logits, u, 30.0, True)
    assert out.shape == (B, N) and out.dtype == jnp.float32
    assert jnp.allclose(out, ref, atol=1e-6), (out, ref)

    # 2) multi-tile hard mode (parallel grid, edge-tile masking, odd N, B % tile != 0)
    B2, N2 = 30, 200
    logits2 = jax.random.normal(k3, (B2, N2), dtype=jnp.float32)
    u2 = jax.random.uniform(k4, (B2, N2), dtype=jnp.float32)
    out2 = jax.block_until_ready(gumbel_softmax_sampling(
        logits2, u2, temperature=30.0, hard=True, batch_tile=8))
    ref2 = _reference(logits2, u2, 30.0, True)
    assert jnp.allclose(out2, ref2, atol=1e-6)

    # 3) soft mode (exact divide -> tight tolerance)
    out3 = jax.block_until_ready(gumbel_softmax_sampling(
        logits2, u2, temperature=30.0, hard=False, batch_tile=8))
    ref3 = _reference(logits2, u2, 30.0, False)
    assert jnp.allclose(out3, ref3, rtol=1e-5, atol=1e-6)

    # TODO(synk): temperature decay (reduce_temperature), the backward hook, and
    # the straight-through gradient (y_hard - y.detach() + y) are autograd /
    # host-side features with no forward-kernel equivalent; only the forward
    # value is computed here.
    print("KERNEL_OK")
</pallas_src>

<mosaic_0001>
module attributes {stable_mosaic.version = 11 : i64} {
  func.func @_hard_kernel(%arg0: i32, %arg1: memref<4x16xf32, #tpu.memory_space<vmem>>, %arg2: memref<4x16xf32, #tpu.memory_space<vmem>>, %arg3: memref<8x16xf32, #tpu.memory_space<vmem>>) attributes {dimension_semantics = [#tpu.dimension_semantics<parallel>], iteration_bounds = array<i64: 1>, scalar_prefetch = 0 : i64, scratch_operands = 0 : i64, tpu.core_type = #tpu.core_type<tc>, window_params = [{transform_indices = @transform_0, window_bounds = array<i64: 4, 16>}, {transform_indices = @transform_1, window_bounds = array<i64: 4, 16>}, {transform_indices = @transform_2, window_bounds = array<i64: 8, 16>}]} {
    %c0 = arith.constant 0 : index
    %c0_0 = arith.constant 0 : index
    %0 = vector.load %arg1[%c0, %c0_0] : memref<4x16xf32, #tpu.memory_space<vmem>>, vector<4x16xf32>
    %c0_1 = arith.constant 0 : index
    %c0_2 = arith.constant 0 : index
    %1 = vector.load %arg2[%c0_1, %c0_2] : memref<4x16xf32, #tpu.memory_space<vmem>>, vector<4x16xf32>
    %cst = arith.constant 9.99999968E-21 : f32
    %2 = vector.broadcast %cst : f32 to vector<4x16xf32>
    %3 = arith.addf %1, %2 : vector<4x16xf32>
    %4 = math.log %3 : vector<4x16xf32>
    %cst_3 = arith.constant 0.000000e+00 : f32
    %5 = vector.broadcast %cst_3 : f32 to vector<4x16xf32>
    %6 = arith.subf %5, %4 : vector<4x16xf32>
    %cst_4 = arith.constant 9.99999968E-21 : f32
    %7 = vector.broadcast %cst_4 : f32 to vector<4x16xf32>
    %8 = arith.addf %6, %7 : vector<4x16xf32>
    %9 = math.log %8 : vector<4x16xf32>
    %cst_5 = arith.constant 0.000000e+00 : f32
    %10 = vector.broadcast %cst_5 : f32 to vector<4x16xf32>
    %11 = arith.subf %10, %9 : vector<4x16xf32>
    %12 = arith.addf %0, %11 : vector<4x16xf32>
    %13 = tpu.iota {dimensions = array<i32: 1>} : vector<4x16xi32>
    %cst_6 = arith.constant dense<0xFF800000> : vector<4xf32>
    %14 = vector.multi_reduction <maximumf>, %12, %cst_6 [1] : vector<4x16xf32> to vector<4xf32>
    %15 = vector.shape_cast %14 : vector<4xf32> to vector<4x1xf32>
    %16 = vector.broadcast %15 : vector<4x1xf32> to vector<4x16xf32>
    %17 = arith.cmpf oge, %12, %16 : vector<4x16xf32>
    %c16_i32 = arith.constant 16 : i32
    %18 = vector.broadcast %c16_i32 : i32 to vector<4x16xi32>
    %19 = arith.select %17, %13, %18 : vector<4x16xi1>, vector<4x16xi32>
    %cst_7 = arith.constant dense<2147483647> : vector<4xi32>
    %20 = vector.multi_reduction <minsi>, %19, %cst_7 [1] : vector<4x16xi32> to vector<4xi32>
    %21 = vector.shape_cast %20 : vector<4xi32> to vector<4x1xi32>
    %22 = tpu.iota {dimensions = array<i32: 0>} : vector<4x1xi32>
    %c4_i32 = arith.constant 4 : i32
    %23 = arith.muli %arg0, %c4_i32 : i32
    %24 = vector.broadcast %23 : i32 to vector<4x1xi32>
    %25 = arith.addi %24, %22 : vector<4x1xi32>
    %c4_i32_8 = arith.constant 4 : i32
    %26 = vector.broadcast %c4_i32_8 : i32 to vector<4x1xi32>
    %27 = arith.cmpi slt, %25, %26 : vector<4x1xi32>
    %28 = vector.broadcast %21 : vector<4x1xi32> to vector<4x16xi32>
    %29 = arith.cmpi eq, %13, %28 : vector<4x16xi32>
    %30 = vector.broadcast %27 : vector<4x1xi1> to vector<4x16xi1>
    %31 = arith.andi %29, %30 : vector<4x16xi1>
    %cst_9 = arith.constant 1.000000e+00 : f32
    %cst_10 = arith.constant 0.000000e+00 : f32
    %32 = vector.broadcast %cst_9 : f32 to vector<4x16xf32>
    %33 = vector.broadcast %cst_10 : f32 to vector<4x16xf32>
    %34 = arith.select %31, %32, %33 : vector<4x16xi1>, vector<4x16xf32>
    %cst_11 = arith.constant dense<0xFF800000> : vector<16xf32>
    %35 = vector.multi_reduction <maximumf>, %34, %cst_11 [0] : vector<4x16xf32> to vector<16xf32>
    %36 = vector.shape_cast %35 : vector<16xf32> to vector<1x16xf32>
    %37 = vector.shape_cast %36 : vector<1x16xf32> to vector<1x16xf32>
    %38 = vector.broadcast %37 : vector<1x16xf32> to vector<8x16xf32>
    %c0_12 = arith.constant 0 : index
    %c0_13 = arith.constant 0 : index
    %39 = vector.load %arg3[%c0_12, %c0_13] : memref<8x16xf32, #tpu.memory_space<vmem>>, vector<8x16xf32>
    tpu.vector_store %arg3[%c0_12, %c0_13], %38 {strides = array<i32>} : memref<8x16xf32, #tpu.memory_space<vmem>>, vector<8x16xf32>,
    return
  }
  func.func @transform_0(%arg0: i32) -> (i32, i32) {
    %c0_i32 = arith.constant 0 : i32
    %c0_i32_0 = arith.constant 0 : i32
    return %arg0, %c0_i32 : i32, i32
  }
  func.func @transform_1(%arg0: i32) -> (i32, i32) {
    %c0_i32 = arith.constant 0 : i32
    %c0_i32_0 = arith.constant 0 : i32
    return %arg0, %c0_i32 : i32, i32
  }
  func.func @transform_2(%arg0: i32) -> (i32, i32) {
    %c0_i32 = arith.constant 0 : i32
    %c0_i32_0 = arith.constant 0 : i32
    return %arg0, %c0_i32 : i32, i32
  }
}

</mosaic_0001>

<llo_original>
// kernel: gumbel_softmax_sampling.1
$region0: #{gumbel_softmax_sampling.1}
  #allocation0 [shape = 'u32[]', space=smem, size = 0x4, offset = 0x4, fixed_abs, tag = 'smem constant byte address 0x4 - core index']
  #allocation1 [shape = 'u32[144,128]{1,0:T(1,128)}', space=vmem, size = 0x12000, scoped, tag = 'internal scratch']
  %s0 = inlined_call_operand.hbm [shape: f32[4,16], index: 0, kind: input, shape index: {}]
  %s1 = inlined_call_operand.hbm [shape: f32[4,16], index: 1, kind: input, shape index: {}]
  %s2 = inlined_call_operand.vmem [shape: f32[8,16], index: 2, kind: output, shape index: {}]
  %s3 = sld [smem:[#allocation0]]
  $region26: #{gumbel_softmax_sampling.1} parent=0
    _
  %s5 = ssub.s32 1, %s3
  %s6 = scalar_select 0, %s5, %s3
  $region1: #{gumbel_softmax_sampling.1} parent=0
    #allocation2 [shape = 'u8[2048]{0}', space=vmem, size = 0x800, scoped, tag = 'input window, operand 0, single buffered']
    #allocation3 [shape = 's32[1]{0}', space=sflag, size = 0x4, scoped, tag = 'scoped memory for gumbel_softmax_sampling.1']
    #allocation4 [shape = 'u8[2048]{0}', space=vmem, size = 0x800, scoped, tag = 'input window, operand 1, single buffered']
    #allocation5 [shape = 's32[1]{0}', space=sflag, size = 0x4, scoped, tag = 'scoped memory for gumbel_softmax_sampling.1']
    %7 = vsyncpa [#allocation3], 0
    %8 = vsyncpa [#allocation5], 0
    // Predicated region
    $region2: #{gumbel_softmax_sampling.1} parent=1 // pred_check
      _
    $region3: #{gumbel_softmax_sampling.1} parent=1 // pred_check_branch
      %10 = sbr.rel (0) target = $region5
    $region4: #{gumbel_softmax_sampling.1} parent=1 // pred_region
      %s12 = ssub.s32 64, 64
      %13 = vsyncadd [#allocation3], %s12
      %s15 = sshll.u32 [#allocation2], 4
      %s16 = int_to_ptr.vmem [resolvable:$true] %s15
      %18 = dma.hbm_to_vmem [thread:$0]  %s0, 64, %s16, [#allocation3]
    $region5: #{gumbel_softmax_sampling.1} parent=1 // pred_fallthru
      _
    // Predicated region
    $region6: #{gumbel_softmax_sampling.1} parent=1 // pred_check
      _
    $region7: #{gumbel_softmax_sampling.1} parent=1 // pred_check_branch
      %20 = sbr.rel (0) target = $region9
    $region8: #{gumbel_softmax_sampling.1} parent=1 // pred_region
      %s22 = ssub.s32 64, 64
      %23 = vsyncadd [#allocation5], %s22
      %s25 = sshll.u32 [#allocation4], 4
      %s26 = int_to_ptr.vmem [resolvable:$true] %s25
      %28 = dma.hbm_to_vmem [thread:$0]  %s1, 64, %s26, [#allocation5]
    $region9: #{gumbel_softmax_sampling.1} parent=1 // pred_fallthru
      _
    // Predicated region
    $region10: #{gumbel_softmax_sampling.1} parent=1 // pred_check
      _
    $region11: #{gumbel_softmax_sampling.1} parent=1 // pred_check_branch
      %30 = sbr.rel (0) target = $region13
    $region12: #{gumbel_softmax_sampling.1} parent=1 // pred_region
      %31 = dma.done [#allocation3], 64
    $region13: #{gumbel_softmax_sampling.1} parent=1 // pred_fallthru
      _
    // Predicated region
    $region14: #{gumbel_softmax_sampling.1} parent=1 // pred_check
      _
    $region15: #{gumbel_softmax_sampling.1} parent=1 // pred_check_branch
      %33 = sbr.rel (0) target = $region17
    $region16: #{gumbel_softmax_sampling.1} parent=1 // pred_region
      %34 = dma.done [#allocation5], 64
    $region17: #{gumbel_softmax_sampling.1} parent=1 // pred_fallthru
      _
    %v35 = vld [vmem:[#allocation2] sm:$0xf]
    %v36 = vld [vmem:[#allocation4] sm:$0xf]
    %v37 = vadd.f32 %v36, 1e-20
    %v38 = vlog2.pop %v37
    %v39 = vmul.f32 %v38, 0.6931472
    %v40 = vsub.f32 0.0, %v39
    %v41 = vadd.f32 %v40, 1e-20
    %v42 = vlog2.pop %v41
    %v43 = vmul.f32 %v42, 0.6931472
    %v44 = vsub.f32 0.0, %v43
    %v45 = vadd.f32 %v35, %v44
    %v46 = vlaneseq
    %v47 = vand.u32 %v46, 127
    %vm48 = vcmask 125952
    %v49 = vsel %vm48, %v45, -inf
    %50 = vmax.xlane.f32.xlu0 %v49
    %v51 = vpop.xlane.xlu0 %50
    %vm52 = vcmp.ge.f32.partialorder %v45, %v51
    %v53 = vsel %vm52, %v47, 16
    %v54 = vsel %vm48, %v53, 2147483647
    %v55 = vand.u32 %v54, 65535
    %v56 = vshra.s32 %v54, 16
    %v57 = vcvt.s32.f32 %v55
    %v58 = vcvt.s32.f32 %v56
    %59 = vmin.xlane.f32.xlu0 %v58
    %v60 = vpop.xlane.xlu0 %59
    %vm61 = vcmp.eq.f32.partialorder %v58, %v60
    %v62 = vsel %vm61, %v57, inf
    %63 = vmin.xlane.f32.xlu0 %v62
    %v64 = vpop.xlane.xlu0 %63
    %v65 = vcvt.f32.s32 %v64
    %v66 = vcvt.f32.s32 %v60
    %v67 = vshll.u32 %v66, 16
    %v68 = vadd.s32 %v67, %v65
    %v69 = vlaneseq
    %v70 = vshrl.u32 %v69, 7
    %s71 = smul.u32 0, 4
    %v72 = vstv %s71
    %v73 = vadd.s32 %v72, %v70
    %vm74 = vcmp.lt.s32.totalorder %v73, 4
    %vm75 = vcmp.eq.s32.totalorder %v47, %v68
    %v76 = vsel %vm74, 1, 0
    %vm77 = vcmp.eq.s32.totalorder %v76, 1
    %vm78 = vmand %vm75, %vm77
    %v79 = vsel %vm78, 1.0, 0.0
    %v80 = vsel %vm48, %v79, -inf
    %v81 = vrot.slane %v80, 4
    %v82 = vmax.f32 %v80, %v81
    %v83 = vrot.slane %v82, 2
    %v84 = vmax.f32 %v82, %v83
    %v85 = vrot.slane %v84, 1
    %v86 = vmax.f32 %v84, %v85
    %vm87 = vcmask 130048
    %88 = vst.msk [vmem:[%s2] sm:$0xff] %vm87, %v86
    // Predicated region
    $region18: #{gumbel_softmax_sampling.1} parent=1 // pred_check
      _
    $region19: #{gumbel_softmax_sampling.1} parent=1 // pred_check_branch
      %90 = sbr.rel (0) target = $region21
    $region20: #{gumbel_softmax_sampling.1} parent=1 // pred_region
      _
    $region21: #{gumbel_softmax_sampling.1} parent=1 // pred_fallthru
      _
    // Predicated region
    $region22: #{gumbel_softmax_sampling.1} parent=1 // pred_check
      _
    $region23: #{gumbel_softmax_sampling.1} parent=1 // pred_check_branch
      %92 = sbr.rel (0) target = $region25
    $region24: #{gumbel_softmax_sampling.1} parent=1 // pred_region
      _
    $region25: #{gumbel_softmax_sampling.1} parent=1 // pred_fallthru
      _
    %93 = vsyncpa [#allocation3], 1
    %94 = vsyncpa [#allocation5], 1

</llo_original>
